<compile_context>
chip_gen: v7x
topology: tpu7x:2x2x1
jax: 0.10.0
libtpu: 0.0.40
codegen_flags: <defaults>
</compile_context>

<pallas_src>
import jax
import jax.numpy as jnp
from jax.experimental import pallas as pl
from jax.experimental.pallas import tpu as pltpu


def base_layer_forward(representation, length):
    """Default BaseLayer 'forward': trace-time identity (no kernel, zero HLO).

    The abstract forward does no work, so the optimal lowering is no lowering
    at all: returning the inputs keeps XLA free to fuse / propagate layouts /
    reuse buffers across this point and adds zero dispatch cost.
    """
    return representation, length


def _identity_hook_kernel(x_hbm_ref, o_hbm_ref, ran_ref):
    # x_hbm_ref and o_hbm_ref refer to the SAME HBM buffer (aliased via
    # input_output_aliases), so the identity requires no copy and no DMA.
    # The SMEM *scratch* store keeps the Mosaic body non-trivial without
    # adding an output to the custom-call signature.
    del x_hbm_ref, o_hbm_ref
    ran_ref[0] = jnp.int32(1)


def base_layer_forward_pallas_hook(representation, length):
    """Optional Pallas custom-call hook for BaseLayer: zero-copy identity.

    Single aliased HBM output, no grid, no VMEM, no DMA.  Callers that want
    the advertised zero-copy behaviour must donate `representation`
    (e.g. jax.jit(..., donate_argnums=(0,))); otherwise XLA inserts one
    HBM->HBM copy before the call.
    """
    out_rep = pl.pallas_call(
        _identity_hook_kernel,
        out_shape=jax.ShapeDtypeStruct(representation.shape, representation.dtype),
        # Raw HBM refs: no auto-DMA, no VMEM transit, generation-agnostic
        # (v7x's smaller 64 MiB VMEM is irrelevant -- nothing touches VMEM).
        in_specs=[pl.BlockSpec(memory_space=pl.ANY)],
        out_specs=pl.BlockSpec(memory_space=pl.ANY),
        scratch_shapes=[pltpu.SMEM((1,), jnp.int32)],
        # Output 0 is the same buffer as input 0 -> identity with no traffic.
        input_output_aliases={0: 0},
    )(representation)
    return out_rep, length


if __name__ == "__main__":
    key = jax.random.PRNGKey(0)
    k1, _k2 = jax.random.split(key)

    batch, seq, hidden = 2, 8, 32
    representation = jax.random.normal(k1, (batch, seq, hidden), dtype=jnp.float32)
    length = jnp.full((batch,), seq, dtype=jnp.int32)

    # 1) Default forward: trace-time identity -- literally the same arrays.
    out_rep, out_len = base_layer_forward(representation, length)
    assert out_rep is representation
    assert out_len is length

    # Snapshot expected values on the host BEFORE donating the input buffer.
    expected_rep = jax.device_get(representation)
    expected_len = jax.device_get(length)

    # 2) Pallas hook path: explicit donation => the aliased output is truly
    #    zero-copy (no hidden HBM->HBM fallback copy).
    hook = jax.jit(base_layer_forward_pallas_hook, donate_argnums=(0,))
    hook_rep, hook_len = hook(representation, length)
    jax.block_until_ready(hook_rep)
    jax.block_until_ready(hook_len)
    # NOTE: `representation` may be invalidated (donated) past this point;
    # all checks use the host snapshot.

    assert hook_rep.shape == (batch, seq, hidden)
    assert hook_rep.dtype == jnp.float32
    assert bool(jnp.all(hook_rep == jnp.asarray(expected_rep)))
    assert bool(jnp.all(hook_len == jnp.asarray(expected_len)))

    print("KERNEL_OK")
</pallas_src>

<mosaic_0001>
module attributes {stable_mosaic.version = 11 : i64} {
  func.func @_identity_hook_kernel(%arg0: memref<2x8x32xf32, #tpu.memory_space<any>>, %arg1: memref<2x8x32xf32, #tpu.memory_space<any>>, %arg2: memref<1xi32, #tpu.memory_space<smem>>) attributes {dimension_semantics = [], scalar_prefetch = 0 : i64, scratch_operands = 1 : i64, tpu.core_type = #tpu.core_type<tc>} {
    %c1_i32 = arith.constant 1 : i32
    %c0 = arith.constant 0 : index
    %0 = memref.load %arg2[%c0] : memref<1xi32, #tpu.memory_space<smem>>
    memref.store %c1_i32, %arg2[%c0] : memref<1xi32, #tpu.memory_space<smem>>
    return
  }
}

</mosaic_0001>

<llo_original>
// kernel: base_layer_forward_pallas_hook.1
$region0: #{base_layer_forward_pallas_hook.1}
  #allocation0 [shape = 'u32[]', space=smem, size = 0x4, offset = 0x4, fixed_abs, tag = 'smem constant byte address 0x4 - core index']
  #allocation1 [shape = 'u32[144,128]{1,0:T(1,128)}', space=vmem, size = 0x12000, scoped, tag = 'internal scratch']
  #allocation2 [shape = 's32[1]{0:T(128)}', space=smem, size = 0x200, scoped, tag = 'scratch operand']
  %s0 = inlined_call_operand.hbm [shape: f32[2,8,32], index: 0, kind: input, shape index: {}, may-alias: {0,1}]
  %s1 = inlined_call_operand.hbm [shape: f32[2,8,32], index: 1, kind: output, shape index: {}, may-alias: {0,1}]
  %s2 = sld [smem:[#allocation0]]
  $region2: #{base_layer_forward_pallas_hook.1} parent=0
    _
  %s4 = ssub.s32 1, %s2
  %s5 = scalar_select 0, %s4, %s2
  %s6 = scalar_lea.smem [#allocation2], 0
  %7 = sst [smem:[%s6]] 1

</llo_original>
